<compile_context>
chip_gen: v6e
topology: v6e:2x2x1
jax: 0.10.0
libtpu: 0.0.40
codegen_flags: <defaults>
</compile_context>

<pallas_src>
import jax
import jax.numpy as jnp
from jax.experimental import pallas as pl
from jax.experimental.pallas import tpu as pltpu


def _lrn_kernel(x_ref, o_ref):
    # x_ref / o_ref: (NB, C, T) block. C on sublanes, T (multiple of 128) on lanes.
    x = x_ref[...].astype(jnp.float32)          # cast BEFORE squaring
    xsq = x * x
    nb, c, t = xsq.shape

    # Size-5 cross-channel windowed sum with zero padding at the channel edges,
    # expressed as sublane shifts + adds (no MXU, edge clipping handled exactly
    # by the zero pad).
    z = jnp.zeros((nb, 2, t), jnp.float32)
    p = jnp.concatenate([z, xsq, z], axis=1)    # (NB, C + 4, T)
    sumsq = (p[:, 0:c, :] + p[:, 1:c + 1, :] + p[:, 2:c + 2, :]
             + p[:, 3:c + 3, :] + p[:, 4:c + 4, :])

    # den^-0.75 = rsqrt(den) * rsqrt(sqrt(den));  den >= 2 so this is stable.
    den = 2.0 + 1e-4 * sumsq
    inv = jax.lax.rsqrt(den) * jax.lax.rsqrt(jnp.sqrt(den))
    o_ref[...] = (x * inv).astype(o_ref.dtype)


def lrn_pallas(x, *, lane_tile_cap=8192, f32_tile_byte_cap=1 << 20):
    """x: (N, C, H, W) -> (N, C, H, W), same dtype."""
    N, C, H, W = x.shape
    HW = H * W
    xr = x.reshape(N, C, HW)

    # Pad the spatial axis to a multiple of 128 so stores are lane-dense
    # (unmasked vst); trimmed again after the kernel.
    HW_p = ((HW + 127) // 128) * 128
    if HW_p != HW:
        xr = jnp.pad(xr, ((0, 0), (0, 0), (0, HW_p - HW)))

    elem = jnp.dtype(x.dtype).itemsize
    if N * C * HW_p * elem <= (1 << 20):
        # Tiny problem: one un-gridded block; per-grid-step pipeline overhead
        # (~0.35 us) would otherwise dominate wall time.
        NB, T = N, HW_p
    else:
        # Tile the lane axis. Keep each f32 working tile around <= 1 MiB so
        # double-buffered in/out DMA buffers plus f32 intermediates fit the
        # default scoped-VMEM budget on v5e/v6e/v7x; lanes a multiple of 128,
        # capped at 8192.
        NB = 1
        t_budget = max(128, ((f32_tile_byte_cap // (C * 4)) // 128) * 128)
        T = int(min(HW_p, lane_tile_cap, t_budget))

    grid = (N // NB, pl.cdiv(HW_p, T))

    out = pl.pallas_call(
        _lrn_kernel,
        out_shape=jax.ShapeDtypeStruct((N, C, HW_p), x.dtype),
        grid_spec=pltpu.PrefetchScalarGridSpec(
            num_scalar_prefetch=0,
            grid=grid,
            in_specs=[pl.BlockSpec((NB, C, T), lambda n, t: (n, 0, t))],
            out_specs=pl.BlockSpec((NB, C, T), lambda n, t: (n, 0, t)),
        ),
        compiler_params=pltpu.CompilerParams(
            # Both axes independent -> megacore can shard either on v7x.
            dimension_semantics=("parallel", "parallel"),
            vmem_limit_bytes=32 * 1024 * 1024,
        ),
    )(xr)

    if HW_p != HW:
        out = out[:, :, :HW]
    return out.reshape(N, C, H, W)


def lrn_reference(x):
    """Pure-JAX reference matching the PyTorch forward exactly."""
    N, C, H, W = x.shape
    xsq = x.astype(jnp.float32) ** 2
    padded = jnp.pad(xsq, ((0, 0), (2, 2), (0, 0), (0, 0)))
    s = sum(padded[:, k:k + C] for k in range(5))
    return (x.astype(jnp.float32) / (2.0 + 1e-4 * s) ** 0.75).astype(x.dtype)


if __name__ == "__main__":
    key = jax.random.PRNGKey(0)

    # Required small shape (single-block fast path).
    N, C, H, W = 2, 4, 16, 16
    x = jax.random.normal(key, (N, C, H, W), dtype=jnp.float32)
    out = jax.block_until_ready(lrn_pallas(x))
    ref = lrn_reference(x)
    assert out.shape == (N, C, H, W)
    assert out.dtype == x.dtype
    assert jnp.allclose(out, ref, atol=5e-5, rtol=5e-5), "mismatch vs reference (small)"

    # Larger shape to exercise the tiled (1, C, T) lane-axis pipeline path.
    key2 = jax.random.PRNGKey(0)
    x2 = jax.random.normal(key2, (2, 16, 128, 128), dtype=jnp.float32)
    out2 = jax.block_until_ready(lrn_pallas(x2))
    ref2 = lrn_reference(x2)
    assert jnp.allclose(out2, ref2, atol=5e-5, rtol=5e-5), "mismatch vs reference (tiled)"

    print("KERNEL_OK")
</pallas_src>

<mosaic_0001>
module attributes {stable_mosaic.version = 11 : i64} {
  func.func @_lrn_kernel(%arg0: i32, %arg1: i32, %arg2: memref<2x4x256xf32, #tpu.memory_space<vmem>>, %arg3: memref<2x4x256xf32, #tpu.memory_space<vmem>>) attributes {dimension_semantics = [#tpu.dimension_semantics<parallel>, #tpu.dimension_semantics<parallel>], iteration_bounds = array<i64: 1, 1>, scalar_prefetch = 0 : i64, scratch_operands = 0 : i64, tpu.core_type = #tpu.core_type<tc>, window_params = [{transform_indices = @transform_0, window_bounds = array<i64: 2, 4, 256>}, {transform_indices = @transform_1, window_bounds = array<i64: 2, 4, 256>}]} {
    %c0 = arith.constant 0 : index
    %c0_0 = arith.constant 0 : index
    %c0_1 = arith.constant 0 : index
    %0 = vector.load %arg2[%c0, %c0_0, %c0_1] : memref<2x4x256xf32, #tpu.memory_space<vmem>>, vector<2x4x256xf32>
    %1 = arith.mulf %0, %0 : vector<2x4x256xf32>
    %cst = arith.constant 0.000000e+00 : f32
    %2 = vector.broadcast %cst : f32 to vector<2x2x256xf32>
    %3 = tpu.concatenate %2, %1, %2 in 1 : vector<2x2x256xf32>, vector<2x4x256xf32>, vector<2x2x256xf32> -> vector<2x8x256xf32>
    %4 = vector.extract_strided_slice %3 {offsets = [0, 0, 0], sizes = [2, 4, 256], strides = [1, 1, 1]} : vector<2x8x256xf32> to vector<2x4x256xf32>
    %5 = vector.extract_strided_slice %3 {offsets = [0, 1, 0], sizes = [2, 4, 256], strides = [1, 1, 1]} : vector<2x8x256xf32> to vector<2x4x256xf32>
    %6 = arith.addf %4, %5 : vector<2x4x256xf32>
    %7 = vector.extract_strided_slice %3 {offsets = [0, 2, 0], sizes = [2, 4, 256], strides = [1, 1, 1]} : vector<2x8x256xf32> to vector<2x4x256xf32>
    %8 = arith.addf %6, %7 : vector<2x4x256xf32>
    %9 = vector.extract_strided_slice %3 {offsets = [0, 3, 0], sizes = [2, 4, 256], strides = [1, 1, 1]} : vector<2x8x256xf32> to vector<2x4x256xf32>
    %10 = arith.addf %8, %9 : vector<2x4x256xf32>
    %11 = vector.extract_strided_slice %3 {offsets = [0, 4, 0], sizes = [2, 4, 256], strides = [1, 1, 1]} : vector<2x8x256xf32> to vector<2x4x256xf32>
    %12 = arith.addf %10, %11 : vector<2x4x256xf32>
    %cst_2 = arith.constant 9.99999974E-5 : f32
    %13 = vector.broadcast %cst_2 : f32 to vector<2x4x256xf32>
    %14 = arith.mulf %13, %12 : vector<2x4x256xf32>
    %cst_3 = arith.constant 2.000000e+00 : f32
    %15 = vector.broadcast %cst_3 : f32 to vector<2x4x256xf32>
    %16 = arith.addf %15, %14 : vector<2x4x256xf32>
    %17 = math.rsqrt %16 : vector<2x4x256xf32>
    %18 = math.sqrt %16 : vector<2x4x256xf32>
    %19 = math.rsqrt %18 : vector<2x4x256xf32>
    %20 = arith.mulf %17, %19 : vector<2x4x256xf32>
    %21 = arith.mulf %0, %20 : vector<2x4x256xf32>
    %c0_4 = arith.constant 0 : index
    %c0_5 = arith.constant 0 : index
    %c0_6 = arith.constant 0 : index
    %22 = vector.load %arg3[%c0_4, %c0_5, %c0_6] : memref<2x4x256xf32, #tpu.memory_space<vmem>>, vector<2x4x256xf32>
    tpu.vector_store %arg3[%c0_4, %c0_5, %c0_6], %21 {strides = array<i32>} : memref<2x4x256xf32, #tpu.memory_space<vmem>>, vector<2x4x256xf32>,
    return
  }
  func.func @transform_0(%arg0: i32, %arg1: i32) -> (i32, i32, i32) {
    %c0_i32 = arith.constant 0 : i32
    %c0_i32_0 = arith.constant 0 : i32
    return %arg0, %c0_i32, %arg1 : i32, i32, i32
  }
  func.func @transform_1(%arg0: i32, %arg1: i32) -> (i32, i32, i32) {
    %c0_i32 = arith.constant 0 : i32
    %c0_i32_0 = arith.constant 0 : i32
    return %arg0, %c0_i32, %arg1 : i32, i32, i32
  }
}

</mosaic_0001>

<llo_original>
// kernel: tpu_custom_call.1
$region0: #{tpu_custom_call.1}
  #allocation0 [shape = 'u32[]', space=smem, size = 0x4, offset = 0x4, fixed_abs, tag = 'smem constant byte address 0x4 - core index']
  #allocation1 [shape = 'u32[144,128]{1,0:T(1,128)}', space=vmem, size = 0x12000, scoped, tag = 'internal scratch']
  %s0 = inlined_call_operand.hbm [shape: f32[2,4,256], index: 0, kind: input, shape index: {}]
  %s1 = inlined_call_operand.hbm [shape: f32[2,4,256], index: 1, kind: output, shape index: {}]
  %s2 = sld [smem:[#allocation0]]
  $region18: #{tpu_custom_call.1} parent=0
    _
  %s4 = ssub.s32 1, %s2
  %s5 = scalar_select 0, %s4, %s2
  $region1: #{tpu_custom_call.1} parent=0
    #allocation2 [shape = 'u8[8192]{0}', space=vmem, size = 0x2000, scoped, tag = 'input window, operand 0, single buffered']
    #allocation3 [shape = 's32[1]{0}', space=sflag, size = 0x4, scoped, tag = 'scoped memory for tpu_custom_call.1']
    #allocation4 [shape = 's32[1]{0}', space=sflag, size = 0x4, scoped, tag = 'scoped memory for tpu_custom_call.1']
    #allocation5 [shape = 'u8[8192]{0}', space=vmem, size = 0x2000, scoped, tag = 'output window, operand 0, single buffered']
    %6 = vsyncpa [#allocation3], 0
    %7 = vsyncpa [#allocation4], 0
    // Predicated region
    $region2: #{tpu_custom_call.1} parent=1 // pred_check
      _
    $region3: #{tpu_custom_call.1} parent=1 // pred_check_branch
      %9 = sbr.rel (0) target = $region5
    $region4: #{tpu_custom_call.1} parent=1 // pred_region
      %s11 = ssub.s32 256, 256
      %12 = vsyncadd [#allocation3], %s11
      %s13 = sshll.u32 [#allocation2], 4
      %s14 = int_to_ptr.vmem [resolvable:$true] %s13
      %19 = dma.hbm_to_vmem [thread:$0]  %s0, 256, %s14, [#allocation3], 128, 128, 8
    $region5: #{tpu_custom_call.1} parent=1 // pred_fallthru
      _
    // Predicated region
    $region6: #{tpu_custom_call.1} parent=1 // pred_check
      _
    $region7: #{tpu_custom_call.1} parent=1 // pred_check_branch
      %21 = sbr.rel (0) target = $region9
    $region8: #{tpu_custom_call.1} parent=1 // pred_region
      %22 = dma.done [#allocation3], 256
    $region9: #{tpu_custom_call.1} parent=1 // pred_fallthru
      _
    %v23 = vld [vmem:[#allocation2] sm:$0xff]
    %v24 = vld [vmem:[#allocation2 + $0x8] sm:$0xff]
    %v25 = vmul.f32 %v23, %v23
    %v26 = vmul.f32 %v24, %v24
    %v29 = vcombine.high %v25, %v25
    %v30 = vcombine.high %v26, %v26
    %v31 = vrot.slane %v25, 6
    %v32 = vrot.slane %v29, 6
    %v33 = vrot.slane %v26, 6
    %v34 = vrot.slane %v30, 6
    %vm39 = vcmask 1041408
    %v40 = vsel %vm39, 0.0, %v31
    %v41 = vsel %vm39, 0.0, %v32
    %v42 = vsel %vm39, 0.0, %v33
    %v43 = vsel %vm39, 0.0, %v34
    %vm44 = vcmask 1045504
    %v45 = vsel %vm44, %v40, 0.0
    %v46 = vsel %vm44, %v41, 0.0
    %v47 = vsel %vm44, %v42, 0.0
    %v48 = vsel %vm44, %v43, 0.0
    %v53 = vrot.slane %v45, 1
    %v54 = vrot.slane %v46, 1
    %v55 = vrot.slane %v47, 1
    %v56 = vrot.slane %v48, 1
    %v61 = vadd.f32 %v45, %v53
    %v62 = vadd.f32 %v46, %v54
    %v63 = vadd.f32 %v47, %v55
    %v64 = vadd.f32 %v48, %v56
    %v65 = vrot.slane %v45, 2
    %v66 = vrot.slane %v46, 2
    %v67 = vrot.slane %v47, 2
    %v68 = vrot.slane %v48, 2
    %v73 = vadd.f32 %v61, %v65
    %v74 = vadd.f32 %v62, %v66
    %v75 = vadd.f32 %v63, %v67
    %v76 = vadd.f32 %v64, %v68
    %v77 = vrot.slane %v45, 3
    %v78 = vrot.slane %v46, 3
    %v79 = vrot.slane %v47, 3
    %v80 = vrot.slane %v48, 3
    %v85 = vadd.f32 %v73, %v77
    %v86 = vadd.f32 %v74, %v78
    %v87 = vadd.f32 %v75, %v79
    %v88 = vadd.f32 %v76, %v80
    %v89 = vrot.slane %v45, 4
    %v90 = vrot.slane %v46, 4
    %v91 = vrot.slane %v47, 4
    %v92 = vrot.slane %v48, 4
    %v97 = vadd.f32 %v85, %v89
    %v98 = vadd.f32 %v86, %v90
    %v99 = vadd.f32 %v87, %v91
    %v100 = vadd.f32 %v88, %v92
    %v101 = vmul.f32 %v97, 0.0001
    %v102 = vmul.f32 %v98, 0.0001
    %v103 = vmul.f32 %v99, 0.0001
    %v104 = vmul.f32 %v100, 0.0001
    %v105 = vadd.f32 %v101, 2.0
    %v106 = vadd.f32 %v102, 2.0
    %v107 = vadd.f32 %v103, 2.0
    %v108 = vadd.f32 %v104, 2.0
    %v109 = vrsqrt.pop %v105
    %v110 = vrsqrt.pop %v106
    %v111 = vrsqrt.pop %v107
    %v112 = vrsqrt.pop %v108
    %v113 = vrsqrt.pop %v105
    %v114 = vmul.f32 %v105, %v113
    %vm115 = vcmp.eq.f32.partialorder %v105, inf
    %v116 = vsel %vm115, %v105, %v114
    %vm117 = vcmp.eq.f32.partialorder %v105, 0.0
    %v118 = vand.u32 %v105, 2147483648
    %v119 = vsel %vm117, %v118, %v116
    %v120 = vrsqrt.pop %v106
    %v121 = vmul.f32 %v106, %v120
    %vm122 = vcmp.eq.f32.partialorder %v106, inf
    %v123 = vsel %vm122, %v106, %v121
    %vm124 = vcmp.eq.f32.partialorder %v106, 0.0
    %v125 = vand.u32 %v106, 2147483648
    %v126 = vsel %vm124, %v125, %v123
    %v127 = vrsqrt.pop %v107
    %v128 = vmul.f32 %v107, %v127
    %vm129 = vcmp.eq.f32.partialorder %v107, inf
    %v130 = vsel %vm129, %v107, %v128
    %vm131 = vcmp.eq.f32.partialorder %v107, 0.0
    %v132 = vand.u32 %v107, 2147483648
    %v133 = vsel %vm131, %v132, %v130
    %v134 = vrsqrt.pop %v108
    %v135 = vmul.f32 %v108, %v134
    %vm136 = vcmp.eq.f32.partialorder %v108, inf
    %v137 = vsel %vm136, %v108, %v135
    %vm138 = vcmp.eq.f32.partialorder %v108, 0.0
    %v139 = vand.u32 %v108, 2147483648
    %v140 = vsel %vm138, %v139, %v137
    %v141 = vrsqrt.pop %v119
    %v142 = vrsqrt.pop %v126
    %v143 = vrsqrt.pop %v133
    %v144 = vrsqrt.pop %v140
    %v145 = vmul.f32 %v109, %v141
    %v146 = vmul.f32 %v110, %v142
    %v147 = vmul.f32 %v111, %v143
    %v148 = vmul.f32 %v112, %v144
    %v153 = vcombine.low %v145, %v146
    %v154 = vcombine.low %v147, %v148
    %v157 = vmul.f32 %v23, %v153
    %v158 = vmul.f32 %v24, %v154
    %159 = vst [vmem:[#allocation5] sm:$0xff] %v157
    %160 = vst [vmem:[#allocation5 + $0x8] sm:$0xff] %v158
    // Predicated region
    $region10: #{tpu_custom_call.1} parent=1 // pred_check
      _
    $region11: #{tpu_custom_call.1} parent=1 // pred_check_branch
      %162 = sbr.rel (0) target = $region13
    $region12: #{tpu_custom_call.1} parent=1 // pred_region
      %s164 = ssub.s32 256, 256
      %165 = vsyncadd [#allocation4], %s164
      %s166 = sshll.u32 [#allocation5], 4
      %s167 = int_to_ptr.vmem [resolvable:$true] %s166
      %172 = dma.vmem_to_hbm [thread:$0]  %s167, 256, %s1, [#allocation4], 128, 128, 8
    $region13: #{tpu_custom_call.1} parent=1 // pred_fallthru
      _
    // Predicated region
    $region14: #{tpu_custom_call.1} parent=1 // pred_check
      _
    $region15: #{tpu_custom_call.1} parent=1 // pred_check_branch
      %174 = sbr.rel (0) target = $region17
    $region16: #{tpu_custom_call.1} parent=1 // pred_region
      %175 = dma.done [#allocation4], 256
    $region17: #{tpu_custom_call.1} parent=1 // pred_fallthru
      _
    %176 = vsyncpa [#allocation3], 1
    %177 = vsyncpa [#allocation4], 1

</llo_original>
